<compile_context>
chip_gen: v6e
topology: v6e:2x2x1
jax: 0.10.0
libtpu: 0.0.40
codegen_flags: <defaults>
</compile_context>

<pallas_src>
import functools

import jax
import jax.numpy as jnp
from jax.experimental import pallas as pl
from jax.experimental.pallas import tpu as pltpu


def qnet_kernel(x_ref, w1_ref, b1_ref, w2_ref, b2_ref, w3_ref, b3_ref, o_ref,
                *, compute_dtype):
    # Fused forward: three MXU matmuls (compute_dtype operands, f32 accumulate)
    # + f32 bias add + ReLU on the VPU, single store of the (tb, A) tile.
    # All casts are in-kernel VPU work hidden under the x DMA.
    x = x_ref[...].astype(compute_dtype)
    w1 = w1_ref[...].astype(compute_dtype)
    w2 = w2_ref[...].astype(compute_dtype)
    w3 = w3_ref[...].astype(compute_dtype)

    h1 = jnp.dot(x, w1, preferred_element_type=jnp.float32) + b1_ref[...]
    h1 = jnp.maximum(h1, 0.0).astype(compute_dtype)

    h2 = jnp.dot(h1, w2, preferred_element_type=jnp.float32) + b2_ref[...]
    h2 = jnp.maximum(h2, 0.0).astype(compute_dtype)

    out = jnp.dot(h2, w3, preferred_element_type=jnp.float32) + b3_ref[...]
    o_ref[...] = out.astype(o_ref.dtype)


def _default_batch_tile(B, max_tile=4096):
    """Batch tile giving >=4 grid steps (>=2 per TC on v7x megacore), an even
    step count when possible, rows a multiple of 8, capped at `max_tile`.
    Sweep max_tile in {1024, 2048, 4096, 8192} if profiling; per-step HBM DMA
    at S~16 is tens of ns, so bigger tiles mostly amortize step overhead."""
    if B <= 32:
        return B                       # tiny batch: one step, not worth tiling
    steps = max(4, pl.cdiv(B, max_tile))
    if steps % 2:
        steps += 1                     # balanced 2-TC split on v7x
    tb = pl.cdiv(B, steps)
    tb = max(8, pl.cdiv(tb, 8) * 8)    # sublane (8) alignment
    return min(tb, B)


def qnetwork_forward(x, params, *, batch_tile=None,
                     compute_dtype=jnp.bfloat16, out_dtype=jnp.float32):
    """QNetwork forward pass with a fused Pallas TPU kernel.

    x      : (B, state_size) float32 (read f32 from HBM, cast in-kernel)
    params : dict with w1 (S,64), b1 (1,64), w2 (64,64), b2 (1,64),
             w3 (64,A), b3 (1,A); weights stored as (in, out) so y = x @ W + b.
    Returns (B, A) Q-values in `out_dtype` (default float32).
    """
    B, S = x.shape
    H1 = params["w1"].shape[1]
    H2 = params["w2"].shape[1]
    A = params["w3"].shape[1]
    assert params["w1"].shape == (S, H1)
    assert params["w2"].shape == (H1, H2)
    assert params["w3"].shape == (H2, A)

    tb = batch_tile if batch_tile is not None else _default_batch_tile(B)
    grid = (pl.cdiv(B, tb),)

    # Biases stay f32 (added onto the f32 accumulator).
    b1 = params["b1"].astype(jnp.float32)
    b2 = params["b2"].astype(jnp.float32)
    b3 = params["b3"].astype(jnp.float32)

    # Constant index_maps -> weights/biases (~42 KB f32) DMA'd once, resident
    # in VMEM for every grid step.
    full = lambda shape: pl.BlockSpec(shape, lambda i: tuple(0 for _ in shape))

    kernel = functools.partial(qnet_kernel, compute_dtype=compute_dtype)

    return pl.pallas_call(
        kernel,
        out_shape=jax.ShapeDtypeStruct((B, A), out_dtype),
        grid_spec=pltpu.PrefetchScalarGridSpec(
            num_scalar_prefetch=0,
            grid=grid,
            in_specs=[
                pl.BlockSpec((tb, S), lambda i: (i, 0)),  # x tile over batch
                full((S, H1)),
                full((1, H1)),
                full((H1, H2)),
                full((1, H2)),
                full((H2, A)),
                full((1, A)),
            ],
            out_specs=pl.BlockSpec((tb, A), lambda i: (i, 0)),
        ),
        compiler_params=pltpu.CompilerParams(
            dimension_semantics=("parallel",),
        ),
    )(x, params["w1"], b1, params["w2"], b2, params["w3"], b3)


def init_params(key, state_size, action_size, hidden=64):
    """Deterministic init mimicking nn.Linear's U(-1/sqrt(fan_in), 1/sqrt(fan_in))."""
    ks = jax.random.split(key, 6)

    def linear(kw, kb, fan_in, fan_out):
        bound = 1.0 / jnp.sqrt(jnp.float32(fan_in))
        w = jax.random.uniform(kw, (fan_in, fan_out), jnp.float32, -bound, bound)
        b = jax.random.uniform(kb, (1, fan_out), jnp.float32, -bound, bound)
        return w, b

    w1, b1 = linear(ks[0], ks[1], state_size, hidden)
    w2, b2 = linear(ks[2], ks[3], hidden, hidden)
    w3, b3 = linear(ks[4], ks[5], hidden, action_size)
    return {"w1": w1, "b1": b1, "w2": w2, "b2": b2, "w3": w3, "b3": b3}


def reference_forward_bf16(x, p, compute_dtype=jnp.bfloat16):
    """Pure-JAX reference using the same bf16-operand / f32-accumulate recipe."""
    xc = x.astype(compute_dtype)
    w1 = p["w1"].astype(compute_dtype)
    w2 = p["w2"].astype(compute_dtype)
    w3 = p["w3"].astype(compute_dtype)
    h1 = jnp.maximum(
        jnp.dot(xc, w1, preferred_element_type=jnp.float32) + p["b1"], 0.0
    ).astype(compute_dtype)
    h2 = jnp.maximum(
        jnp.dot(h1, w2, preferred_element_type=jnp.float32) + p["b2"], 0.0
    ).astype(compute_dtype)
    return jnp.dot(h2, w3, preferred_element_type=jnp.float32) + p["b3"]


def reference_forward_f32(x, p):
    h1 = jnp.maximum(x @ p["w1"] + p["b1"], 0.0)
    h2 = jnp.maximum(h1 @ p["w2"] + p["b2"], 0.0)
    return h2 @ p["w3"] + p["b3"]


if __name__ == "__main__":
    key = jax.random.PRNGKey(0)
    k_params, k_x = jax.random.split(key)

    # Small but non-degenerate: batch=256 -> default tile 64 -> grid=(4,),
    # so pipelining and a balanced v7x megacore split are actually exercised.
    batch = 256
    state_size = 8
    action_size = 4

    params = init_params(k_params, state_size, action_size)
    x = jax.random.normal(k_x, (batch, state_size), jnp.float32)

    out = qnetwork_forward(x, params)
    out = jax.block_until_ready(out)
    assert out.shape == (batch, action_size)
    assert out.dtype == jnp.float32

    # Tight check vs a reference using the identical bf16/f32-accum recipe.
    ref_bf16 = reference_forward_bf16(x, params)
    assert jnp.allclose(out, ref_bf16, atol=1e-2, rtol=1e-2), "mismatch vs bf16 reference"

    # Loose sanity check vs the full-f32 PyTorch-equivalent forward
    # (bf16 operands introduce ~0.5-2% error; accumulation stays f32).
    ref_f32 = reference_forward_f32(x, params)
    assert jnp.allclose(out, ref_f32, atol=5e-2, rtol=5e-2), "mismatch vs f32 reference"

    print("KERNEL_OK")
</pallas_src>

<mosaic_0001>
module attributes {stable_mosaic.version = 11 : i64} {
  func.func @qnet_kernel(%arg0: i32, %arg1: memref<64x8xf32, #tpu.memory_space<vmem>>, %arg2: memref<8x64xf32, #tpu.memory_space<vmem>>, %arg3: memref<1x64xf32, #tpu.memory_space<vmem>>, %arg4: memref<64x64xf32, #tpu.memory_space<vmem>>, %arg5: memref<1x64xf32, #tpu.memory_space<vmem>>, %arg6: memref<64x4xf32, #tpu.memory_space<vmem>>, %arg7: memref<1x4xf32, #tpu.memory_space<vmem>>, %arg8: memref<64x4xf32, #tpu.memory_space<vmem>>) attributes {dimension_semantics = [#tpu.dimension_semantics<parallel>], iteration_bounds = array<i64: 4>, scalar_prefetch = 0 : i64, scratch_operands = 0 : i64, tpu.core_type = #tpu.core_type<tc>, window_params = [{transform_indices = @transform_0, window_bounds = array<i64: 64, 8>}, {pipeline_mode = #tpu.pipeline_mode<synchronous>, transform_indices = @transform_1, window_bounds = array<i64: 8, 64>}, {pipeline_mode = #tpu.pipeline_mode<synchronous>, transform_indices = @transform_2, window_bounds = array<i64: 1, 64>}, {pipeline_mode = #tpu.pipeline_mode<synchronous>, transform_indices = @transform_3, window_bounds = array<i64: 64, 64>}, {pipeline_mode = #tpu.pipeline_mode<synchronous>, transform_indices = @transform_4, window_bounds = array<i64: 1, 64>}, {pipeline_mode = #tpu.pipeline_mode<synchronous>, transform_indices = @transform_5, window_bounds = array<i64: 64, 4>}, {pipeline_mode = #tpu.pipeline_mode<synchronous>, transform_indices = @transform_6, window_bounds = array<i64: 1, 4>}, {transform_indices = @transform_7, window_bounds = array<i64: 64, 4>}]} {
    %c0 = arith.constant 0 : index
    %c0_0 = arith.constant 0 : index
    %0 = vector.load %arg1[%c0, %c0_0] : memref<64x8xf32, #tpu.memory_space<vmem>>, vector<64x8xf32>
    %1 = arith.truncf %0 : vector<64x8xf32> to vector<64x8xbf16>
    %c0_1 = arith.constant 0 : index
    %c0_2 = arith.constant 0 : index
    %2 = vector.load %arg2[%c0_1, %c0_2] : memref<8x64xf32, #tpu.memory_space<vmem>>, vector<8x64xf32>
    %3 = arith.truncf %2 : vector<8x64xf32> to vector<8x64xbf16>
    %c0_3 = arith.constant 0 : index
    %c0_4 = arith.constant 0 : index
    %4 = vector.load %arg4[%c0_3, %c0_4] : memref<64x64xf32, #tpu.memory_space<vmem>>, vector<64x64xf32>
    %5 = arith.truncf %4 : vector<64x64xf32> to vector<64x64xbf16>
    %c0_5 = arith.constant 0 : index
    %c0_6 = arith.constant 0 : index
    %6 = vector.load %arg6[%c0_5, %c0_6] : memref<64x4xf32, #tpu.memory_space<vmem>>, vector<64x4xf32>
    %7 = arith.truncf %6 : vector<64x4xf32> to vector<64x4xbf16>
    %cst = arith.constant dense<0.000000e+00> : vector<64x64xf32>
    %8 = tpu.matmul %1, %3, %cst {dimension_numbers = #tpu.dot_dimension_numbers<[1], [0], [0], [1], [0, 0, 1, 1], [], []>} : vector<64x8xbf16>, vector<8x64xbf16>, vector<64x64xf32> -> vector<64x64xf32>
    %c0_7 = arith.constant 0 : index
    %c0_8 = arith.constant 0 : index
    %9 = vector.load %arg3[%c0_7, %c0_8] : memref<1x64xf32, #tpu.memory_space<vmem>>, vector<1x64xf32>
    %10 = vector.broadcast %9 : vector<1x64xf32> to vector<64x64xf32>
    %11 = arith.addf %8, %10 : vector<64x64xf32>
    %cst_9 = arith.constant 0.000000e+00 : f32
    %12 = vector.broadcast %cst_9 : f32 to vector<64x64xf32>
    %13 = arith.maximumf %11, %12 : vector<64x64xf32>
    %14 = arith.truncf %13 : vector<64x64xf32> to vector<64x64xbf16>
    %cst_10 = arith.constant dense<0.000000e+00> : vector<64x64xf32>
    %15 = tpu.matmul %14, %5, %cst_10 {dimension_numbers = #tpu.dot_dimension_numbers<[1], [0], [0], [1], [0, 0, 1, 1], [], []>} : vector<64x64xbf16>, vector<64x64xbf16>, vector<64x64xf32> -> vector<64x64xf32>
    %c0_11 = arith.constant 0 : index
    %c0_12 = arith.constant 0 : index
    %16 = vector.load %arg5[%c0_11, %c0_12] : memref<1x64xf32, #tpu.memory_space<vmem>>, vector<1x64xf32>
    %17 = vector.broadcast %16 : vector<1x64xf32> to vector<64x64xf32>
    %18 = arith.addf %15, %17 : vector<64x64xf32>
    %cst_13 = arith.constant 0.000000e+00 : f32
    %19 = vector.broadcast %cst_13 : f32 to vector<64x64xf32>
    %20 = arith.maximumf %18, %19 : vector<64x64xf32>
    %21 = arith.truncf %20 : vector<64x64xf32> to vector<64x64xbf16>
    %cst_14 = arith.constant dense<0.000000e+00> : vector<64x4xf32>
    %22 = tpu.matmul %21, %7, %cst_14 {dimension_numbers = #tpu.dot_dimension_numbers<[1], [0], [0], [1], [0, 0, 1, 1], [], []>} : vector<64x64xbf16>, vector<64x4xbf16>, vector<64x4xf32> -> vector<64x4xf32>
    %c0_15 = arith.constant 0 : index
    %c0_16 = arith.constant 0 : index
    %23 = vector.load %arg7[%c0_15, %c0_16] : memref<1x4xf32, #tpu.memory_space<vmem>>, vector<1x4xf32>
    %24 = vector.broadcast %23 : vector<1x4xf32> to vector<64x4xf32>
    %25 = arith.addf %22, %24 : vector<64x4xf32>
    %c0_17 = arith.constant 0 : index
    %c0_18 = arith.constant 0 : index
    %26 = vector.load %arg8[%c0_17, %c0_18] : memref<64x4xf32, #tpu.memory_space<vmem>>, vector<64x4xf32>
    tpu.vector_store %arg8[%c0_17, %c0_18], %25 {strides = array<i32>} : memref<64x4xf32, #tpu.memory_space<vmem>>, vector<64x4xf32>,
    return
  }
  func.func @transform_0(%arg0: i32) -> (i32, i32) {
    %c0_i32 = arith.constant 0 : i32
    %c0_i32_0 = arith.constant 0 : i32
    return %arg0, %c0_i32 : i32, i32
  }
  func.func @transform_1(%arg0: i32) -> (i32, i32) {
    %c0_i32 = arith.constant 0 : i32
    %c0_i32_0 = arith.constant 0 : i32
    %c0_i32_1 = arith.constant 0 : i32
    return %c0_i32, %c0_i32_0 : i32, i32
  }
  func.func @transform_2(%arg0: i32) -> (i32, i32) {
    %c0_i32 = arith.constant 0 : i32
    %c0_i32_0 = arith.constant 0 : i32
    %c0_i32_1 = arith.constant 0 : i32
    return %c0_i32, %c0_i32_0 : i32, i32
  }
  func.func @transform_3(%arg0: i32) -> (i32, i32) {
    %c0_i32 = arith.constant 0 : i32
    %c0_i32_0 = arith.constant 0 : i32
    %c0_i32_1 = arith.constant 0 : i32
    return %c0_i32, %c0_i32_0 : i32, i32
  }
  func.func @transform_4(%arg0: i32) -> (i32, i32) {
    %c0_i32 = arith.constant 0 : i32
    %c0_i32_0 = arith.constant 0 : i32
    %c0_i32_1 = arith.constant 0 : i32
    return %c0_i32, %c0_i32_0 : i32, i32
  }
  func.func @transform_5(%arg0: i32) -> (i32, i32) {
    %c0_i32 = arith.constant 0 : i32
    %c0_i32_0 = arith.constant 0 : i32
    %c0_i32_1 = arith.constant 0 : i32
    return %c0_i32, %c0_i32_0 : i32, i32
  }
  func.func @transform_6(%arg0: i32) -> (i32, i32) {
    %c0_i32 = arith.constant 0 : i32
    %c0_i32_0 = arith.constant 0 : i32
    %c0_i32_1 = arith.constant 0 : i32
    return %c0_i32, %c0_i32_0 : i32, i32
  }
  func.func @transform_7(%arg0: i32) -> (i32, i32) {
    %c0_i32 = arith.constant 0 : i32
    %c0_i32_0 = arith.constant 0 : i32
    return %arg0, %c0_i32 : i32, i32
  }
}

</mosaic_0001>

<llo_original>
// kernel: tpu_custom_call.1
$region0: #{tpu_custom_call.1}
  #allocation0 [shape = 'u32[]', space=smem, size = 0x4, offset = 0x4, fixed_abs, tag = 'smem constant byte address 0x4 - core index']
  #allocation1 [shape = 'u32[144,128]{1,0:T(1,128)}', space=vmem, size = 0x12000, scoped, tag = 'internal scratch']
  %s0 = inlined_call_operand.vmem [shape: f32[256,8], index: 0, kind: input, shape index: {}]
  %s1 = inlined_call_operand.vmem [shape: f32[8,64], index: 1, kind: input, shape index: {}]
  %s2 = inlined_call_operand.vmem [shape: f32[1,64], index: 2, kind: input, shape index: {}]
  %s3 = inlined_call_operand.vmem [shape: f32[64,64], index: 3, kind: input, shape index: {}]
  %s4 = inlined_call_operand.vmem [shape: f32[1,64], index: 4, kind: input, shape index: {}]
  %s5 = inlined_call_operand.vmem [shape: f32[64,4], index: 5, kind: input, shape index: {}]
  %s6 = inlined_call_operand.vmem [shape: f32[1,4], index: 6, kind: input, shape index: {}]
  %s7 = inlined_call_operand.vmem [shape: f32[256,4], index: 7, kind: output, shape index: {}]
  %s8 = sld [smem:[#allocation0]]
  $region61: #{tpu_custom_call.1} parent=0
    _
  %s10 = ssub.s32 1, %s8
  %s11 = scalar_select 0, %s10, %s8
  loop: start=0, step=1, limit=6
  $region2: #{tpu_custom_call.1} parent=0 // loop_pre_header
    _
  $region3: #{tpu_custom_call.1} parent=0 // loop_header
    %s13 = sphi 0, %s17
    %p14 = scmp.ge.s32.totalorder %s13, 6
    %s23 = sphi 0, %s25
    %s26 = sphi 0, %s23
    %s27 = sphi 0, %s26
    %s43 = sphi 0, %s27
    %s47 = sphi 0, %s47
    %s49 = sphi 0, %s47
    %s50 = sphi 0, %s49
    %s64 = sphi 0, %s50
    %s68 = sphi 0, %s68
    %s70 = sphi 0, %s68
    %s71 = sphi 0, %s70
    %s85 = sphi 0, %s71
    %s89 = sphi 0, %s89
    %s91 = sphi 0, %s89
    %s92 = sphi 0, %s91
    %s106 = sphi 0, %s92
    %s110 = sphi 0, %s110
    %s112 = sphi 0, %s110
    %s113 = sphi 0, %s112
    %s127 = sphi 0, %s113
    %s131 = sphi 0, %s131
    %s133 = sphi 0, %s131
    %s134 = sphi 0, %s133
    %s148 = sphi 0, %s134
    %s152 = sphi 0, %s152
    %s154 = sphi 0, %s152
    %s155 = sphi 0, %s154
    %s169 = sphi 0, %s155
    %s175 = sphi 0, %s177
    %s178 = sphi 0, %s175
    %s179 = sphi 0, %s178
    %s195 = sphi 0, %s179
  $region4: #{tpu_custom_call.1} parent=0 // loop_header_branch
    %16 = sbr.rel (%p14) target = $region8
  $region5: #{tpu_custom_call.1} parent=0 // loop_body
    %s18 = ssub.s32 %s13, 1
    %s19 = ssub.s32 %s13, 2
    %s20 = sadd.s32 %s13, 1
    %s21 = ssub.s32 %s13, %s20
    %p22 = scmp.eq.s32.totalorder %s21, 0
    %s24 = sadd.s32 %s23, 1
    %s25 = scalar_select %p22, %s23, %s24
    %p28 = pneg %p22
    %p29 = scmp.eq.s32.totalorder %s13, 3
    %p30 = por %p28, %p29
    %p31 = scmp.ne.s32.totalorder %s23, %s26
    %p32 = scmp.eq.s32.totalorder %s13, 0
    %p33 = por %p31, %p32
    %p34 = scmp.ne.s32.totalorder %s23, %s26
    %p35 = scmp.eq.s32.totalorder %s18, 3
    %p36 = por %p34, %p35
    %p37 = scmp.ne.s32.totalorder %s26, %s27
    %p38 = scmp.eq.s32.totalorder %s18, 0
    %p39 = por %p37, %p38
    %p40 = scmp.ne.s32.totalorder %s26, %s27
    %p41 = scmp.eq.s32.totalorder %s19, 3
    %p42 = por %p40, %p41
    %p44 = scmp.ne.s32.totalorder %s27, %s43
    %p45 = scmp.eq.s32.totalorder %s19, 0
    %p46 = por %p44, %p45
    %s48 = sadd.s32 %s47, 1
    %p51 = scmp.eq.s32.totalorder %s13, 3
    %p52 = scmp.ne.s32.totalorder %s47, %s49
    %p53 = scmp.eq.s32.totalorder %s13, 0
    %p54 = por %p52, %p53
    %p55 = scmp.ne.s32.totalorder %s47, %s49
    %p56 = scmp.eq.s32.totalorder %s18, 3
    %p57 = por %p55, %p56
    %p58 = scmp.ne.s32.totalorder %s49, %s50
    %p59 = scmp.eq.s32.totalorder %s18, 0
    %p60 = por %p58, %p59
    %p61 = scmp.ne.s32.totalorder %s49, %s50
    %p62 = scmp.eq.s32.totalorder %s19, 3
    %p63 = por %p61, %p62
    %p65 = scmp.ne.s32.totalorder %s50, %s64
    %p66 = scmp.eq.s32.totalorder %s19, 0
    %p67 = por %p65, %p66
    %s69 = sadd.s32 %s68, 1
    %p72 = scmp.eq.s32.totalorder %s13, 3
    %p73 = scmp.ne.s32.totalorder %s68, %s70
    %p74 = scmp.eq.s32.totalorder %s13, 0
    %p75 = por %p73, %p74
    %p76 = scmp.ne.s32.totalorder %s68, %s70
    %p77 = scmp.eq.s32.totalorder %s18, 3
    %p78 = por %p76, %p77
    %p79 = scmp.ne.s32.totalorder %s70, %s71
    %p80 = scmp.eq.s32.totalorder %s18, 0
    %p81 = por %p79, %p80
    %p82 = scmp.ne.s32.totalorder %s70, %s71
    %p83 = scmp.eq.s32.totalorder %s19, 3
    %p84 = por %p82, %p83
    %p86 = scmp.ne.s32.totalorder %s71, %s85
    %p87 = scmp.eq.s32.totalorder %s19, 0
    %p88 = por %p86, %p87
    %s90 = sadd.s32 %s89, 1
    %p93 = scmp.eq.s32.totalorder %s13, 3
    %p94 = scmp.ne.s32.totalorder %s89, %s91
    %p95 = scmp.eq.s32.totalorder %s13, 0
    %p96 = por %p94, %p95
    %p97 = scmp.ne.s32.totalorder %s89, %s91
    %p98 = scmp.eq.s32.totalorder %s18, 3
    %p99 = por %p97, %p98
    %p100 = scmp.ne.s32.totalorder %s91, %s92
    %p101 = scmp.eq.s32.totalorder %s18, 0
    %p102 = por %p100, %p101
    %p103 = scmp.ne.s32.totalorder %s91, %s92
    %p104 = scmp.eq.s32.totalorder %s19, 3
    %p105 = por %p103, %p104
    %p107 = scmp.ne.s32.totalorder %s92, %s106
    %p108 = scmp.eq.s32.totalorder %s19, 0
    %p109 = por %p107, %p108
    %s111 = sadd.s32 %s110, 1
    %p114 = scmp.eq.s32.totalorder %s13, 3
    %p115 = scmp.ne.s32.totalorder %s110, %s112
    %p116 = scmp.eq.s32.totalorder %s13, 0
    %p117 = por %p115, %p116
    %p118 = scmp.ne.s32.totalorder %s110, %s112
    %p119 = scmp.eq.s32.totalorder %s18, 3
    %p120 = por %p118, %p119
    %p121 = scmp.ne.s32.totalorder %s112, %s113
    %p122 = scmp.eq.s32.totalorder %s18, 0
    %p123 = por %p121, %p122
    %p124 = scmp.ne.s32.totalorder %s112, %s113
    %p125 = scmp.eq.s32.totalorder %s19, 3
    %p126 = por %p124, %p125
    %p128 = scmp.ne.s32.totalorder %s113, %s127
    %p129 = scmp.eq.s32.totalorder %s19, 0
    %p130 = por %p128, %p129
    %s132 = sadd.s32 %s131, 1
    %p135 = scmp.eq.s32.totalorder %s13, 3
    %p136 = scmp.ne.s32.totalorder %s131, %s133
    %p137 = scmp.eq.s32.totalorder %s13, 0
    %p138 = por %p136, %p137
    %p139 = scmp.ne.s32.totalorder %s131, %s133
    %p140 = scmp.eq.s32.totalorder %s18, 3
    %p141 = por %p139, %p140
    %p142 = scmp.ne.s32.totalorder %s133, %s134
    %p143 = scmp.eq.s32.totalorder %s18, 0
    %p144 = por %p142, %p143
    %p145 = scmp.ne.s32.totalorder %s133, %s134
    %p146 = scmp.eq.s32.totalorder %s19, 3
    %p147 = por %p145, %p146
    %p149 = scmp.ne.s32.totalorder %s134, %s148
    %p150 = scmp.eq.s32.totalorder %s19, 0
    %p151 = por %p149, %p150
    %s153 = sadd.s32 %s152, 1
    %p156 = scmp.eq.s32.totalorder %s13, 3
    %p157 = scmp.ne.s32.totalorder %s152, %s154
    %p158 = scmp.eq.s32.totalorder %s13, 0
    %p159 = por %p157, %p158
    %p160 = scmp.ne.s32.totalorder %s152, %s154
    %p161 = scmp.eq.s32.totalorder %s18, 3
    %p162 = por %p160, %p161
    %p163 = scmp.ne.s32.totalorder %s154, %s155
    %p164 = scmp.eq.s32.totalorder %s18, 0
    %p165 = por %p163, %p164
    %p166 = scmp.ne.s32.totalorder %s154, %s155
    %p167 = scmp.eq.s32.totalorder %s19, 3
    %p168 = por %p166, %p167
    %p170 = scmp.ne.s32.totalorder %s155, %s169
    %p171 = scmp.eq.s32.totalorder %s19, 0
    %p172 = por %p170, %p171
    %s173 = ssub.s32 %s13, %s20
    %p174 = scmp.eq.s32.totalorder %s173, 0
    %s176 = sadd.s32 %s175, 1
    %s177 = scalar_select %p174, %s175, %s176
    %p180 = pneg %p174
    %p181 = scmp.eq.s32.totalorder %s13, 3
    %p182 = por %p180, %p181
    %p183 = scmp.ne.s32.totalorder %s175, %s178
    %p184 = scmp.eq.s32.totalorder %s13, 0
    %p185 = por %p183, %p184
    %p186 = scmp.ne.s32.totalorder %s175, %s178
    %p187 = scmp.eq.s32.totalorder %s18, 3
    %p188 = por %p186, %p187
    %p189 = scmp.ne.s32.totalorder %s178, %s179
    %p190 = scmp.eq.s32.totalorder %s18, 0
    %p191 = por %p189, %p190
    %p192 = scmp.ne.s32.totalorder %s178, %s179
    %p193 = scmp.eq.s32.totalorder %s19, 3
    %p194 = por %p192, %p193
    %p196 = scmp.ne.s32.totalorder %s179, %s195
    %p197 = scmp.eq.s32.totalorder %s19, 0
    %p198 = por %p196, %p197
    %p199 = scmp.le.s32.totalorder 1, %s13
    %p200 = scmp.lt.s32.totalorder %s13, 5
    %p201 = pnand %p199, %p200
    %p202 = pneg %p201
    // Predicated region
    $region9: #{tpu_custom_call.1} parent=5 // pred_check
      _
    $region10: #{tpu_custom_call.1} parent=5 // pred_check_branch
      %204 = sbr.rel (%p201) target = $region12
    $region11: #{tpu_custom_call.1} parent=5 // pred_region
      %s205 = ssub.s32 %s13, 1
      // Predicated region
      $region13: #{tpu_custom_call.1} parent=11 // pred_check
        %p206 = pneg %p60
      $region14: #{tpu_custom_call.1} parent=11 // pred_check_branch
        %208 = sbr.rel (%p206) target = $region16
      $region15: #{tpu_custom_call.1} parent=11 // pred_region
        _
      $region16: #{tpu_custom_call.1} parent=11 // pred_fallthru
        _
      // Predicated region
      $region17: #{tpu_custom_call.1} parent=11 // pred_check
        %p209 = pneg %p81
      $region18: #{tpu_custom_call.1} parent=11 // pred_check_branch
        %211 = sbr.rel (%p209) target = $region20
      $region19: #{tpu_custom_call.1} parent=11 // pred_region
        _
      $region20: #{tpu_custom_call.1} parent=11 // pred_fallthru
        _
      // Predicated region
      $region21: #{tpu_custom_call.1} parent=11 // pred_check
        %p212 = pneg %p102
      $region22: #{tpu_custom_call.1} parent=11 // pred_check_branch
        %214 = sbr.rel (%p212) target = $region24
      $region23: #{tpu_custom_call.1} parent=11 // pred_region
        _
      $region24: #{tpu_custom_call.1} parent=11 // pred_fallthru
        _
      // Predicated region
      $region25: #{tpu_custom_call.1} parent=11 // pred_check
        %p215 = pneg %p123
      $region26: #{tpu_custom_call.1} parent=11 // pred_check_branch
        %217 = sbr.rel (%p215) target = $region28
      $region27: #{tpu_custom_call.1} parent=11 // pred_region
        _
      $region28: #{tpu_custom_call.1} parent=11 // pred_fallthru
        _
      // Predicated region
      $region29: #{tpu_custom_call.1} parent=11 // pred_check
        %p218 = pneg %p144
      $region30: #{tpu_custom_call.1} parent=11 // pred_check_branch
        %220 = sbr.rel (%p218) target = $region32
      $region31: #{tpu_custom_call.1} parent=11 // pred_region
        _
      $region32: #{tpu_custom_call.1} parent=11 // pred_fallthru
        _
      // Predicated region
      $region33: #{tpu_custom_call.1} parent=11 // pred_check
        %p221 = pneg %p165
      $region34: #{tpu_custom_call.1} parent=11 // pred_check_branch
        %223 = sbr.rel (%p221) target = $region36
      $region35: #{tpu_custom_call.1} parent=11 // pred_region
        _
      $region36: #{tpu_custom_call.1} parent=11 // pred_fallthru
        _
    $region12: #{tpu_custom_call.1} parent=5 // pred_fallthru
      _
    %p224 = scmp.lt.s32.totalorder %s13, 4
    // Predicated region
    $region37: #{tpu_custom_call.1} parent=5 // pred_check
      %p225 = pneg %p224
    $region38: #{tpu_custom_call.1} parent=5 // pred_check_branch
      %227 = sbr.rel (%p225) target = $region40
    $region39: #{tpu_custom_call.1} parent=5 // pred_region
      // Predicated region
      $region41: #{tpu_custom_call.1} parent=39 // pred_check
        %p228 = pneg %p33
      $region42: #{tpu_custom_call.1} parent=39 // pred_check_branch
        %230 = sbr.rel (%p228) target = $region44
      $region43: #{tpu_custom_call.1} parent=39 // pred_region
        %s231 = smul.u32 8, %s13
        %p232 = scmp.lt.s32.totalorder %s231, 31
        %s233 = scalar_select %p232, %s231, 31
        %s234 = smul.addr %s233, 8
        %s235 = scalar_lea.vmem %s0, %s234
        %s236 = smul.u32 8, %s13
      $region44: #{tpu_custom_call.1} parent=39 // pred_fallthru
        _
    $region40: #{tpu_custom_call.1} parent=5 // pred_fallthru
      _
    %p237 = scmp.le.s32.totalorder 1, %s13
    %p238 = scmp.lt.s32.totalorder %s13, 5
    %p239 = pnand %p237, %p238
    %p240 = pneg %p239
    // Predicated region
    $region45: #{tpu_custom_call.1} parent=5 // pred_check
      _
    $region46: #{tpu_custom_call.1} parent=5 // pred_check_branch
      %242 = sbr.rel (%p239) target = $region48
    $region47: #{tpu_custom_call.1} parent=5 // pred_region
      %s243 = ssub.s32 %s13, 1
      %s244 = smul.u32 8, %s18
      %p245 = scmp.lt.s32.totalorder %s244, 31
      %s246 = scalar_select %p245, %s244, 31
      %s247 = smul.addr %s246, 8
      %s248 = scalar_lea.vmem %s0, %s247
      %p249 = pneg %p39
      %p250 = pneg %p36
      %p251 = pneg %p60
      %p252 = pneg %p57
      %p253 = pneg %p81
      %p254 = pneg %p78
      %p255 = pneg %p102
      %p256 = pneg %p99
      %p257 = pneg %p123
      %p258 = pneg %p120
      %p259 = pneg %p144
      %p260 = pneg %p141
      %p261 = pneg %p165
      %p262 = pneg %p162
      %p263 = pneg %p191
      %p264 = pneg %p188
      %s265 = smul.u32 8, %s18
      %p266 = scmp.lt.s32.totalorder %s265, 31
      %s267 = scalar_select %p266, %s265, 31
      %s268 = smul.addr %s267, 8
      %s269 = scalar_lea.vmem %s7, %s268
      %s270 = smul.u32 8, %s18
      %p271 = scmp.lt.s32.totalorder %s270, 31
      %s272 = scalar_select %p271, %s270, 31
      %s273 = smul.addr %s272, 8
      %s274 = scalar_lea.vmem %s0, %s273
      %s275 = smul.u32 8, %s18
      %s276 = smul.u32 8, %s18
      %p277 = scmp.lt.s32.totalorder %s276, 31
      %s278 = scalar_select %p277, %s276, 31
      %s279 = smul.addr %s278, 8
      %s280 = scalar_lea.vmem %s7, %s279
      %s281 = smul.u32 8, %s18
      %v283 = vld [vmem:[%s274] sm:$0xff]
      %v284 = vld [vmem:[%s274 + $0x8] sm:$0xff]
      %v285 = vld [vmem:[%s274 + $0x10] sm:$0xff]
      %v286 = vld [vmem:[%s274 + $0x18] sm:$0xff]
      %v287 = vld [vmem:[%s274 + $0x20] sm:$0xff]
      %v288 = vld [vmem:[%s274 + $0x28] sm:$0xff]
      %v289 = vld [vmem:[%s274 + $0x30] sm:$0xff]
      %v290 = vld [vmem:[%s274 + $0x38] sm:$0xff]
      %v291 = vpack.c.bf16 %v284, %v283
      %v292 = vpack.c.bf16 %v286, %v285
      %v293 = vpack.c.bf16 %v288, %v287
      %v294 = vpack.c.bf16 %v290, %v289
      %v295 = vld [vmem:[%s1] sm:$0xff]
      %v296 = vpack.c.bf16 %v295, %v295
      %v297 = vld [vmem:[%s3] sm:$0xff]
      %v298 = vld [vmem:[%s3 + $0x8] sm:$0xff]
      %v299 = vld [vmem:[%s3 + $0x10] sm:$0xff]
      %v300 = vld [vmem:[%s3 + $0x18] sm:$0xff]
      %v301 = vld [vmem:[%s3 + $0x20] sm:$0xff]
      %v302 = vld [vmem:[%s3 + $0x28] sm:$0xff]
      %v303 = vld [vmem:[%s3 + $0x30] sm:$0xff]
      %v304 = vld [vmem:[%s3 + $0x38] sm:$0xff]
      %v305 = vpack.c.bf16 %v298, %v297
      %v306 = vpack.c.bf16 %v300, %v299
      %v307 = vpack.c.bf16 %v302, %v301
      %v308 = vpack.c.bf16 %v304, %v303
      %v309 = vld [vmem:[%s5] sm:$0xff]
      %v310 = vld [vmem:[%s5 + $0x8] sm:$0xff]
      %v311 = vld [vmem:[%s5 + $0x10] sm:$0xff]
      %v312 = vld [vmem:[%s5 + $0x18] sm:$0xff]
      %v313 = vld [vmem:[%s5 + $0x20] sm:$0xff]
      %v314 = vld [vmem:[%s5 + $0x28] sm:$0xff]
      %v315 = vld [vmem:[%s5 + $0x30] sm:$0xff]
      %v316 = vld [vmem:[%s5 + $0x38] sm:$0xff]
      %v317 = vpack.c.bf16 %v310, %v309
      %v318 = vpack.c.bf16 %v312, %v311
      %v319 = vpack.c.bf16 %v314, %v313
      %v320 = vpack.c.bf16 %v316, %v315
      %v321 = vld [vmem:[%s2] sm:$0x1]
      %v323 = vlaneseq
      %v324 = vshrl.u32 %v323, 7
      %v325 = vsub.s32 0, %v324
      %v326 = vrot.slane %v321, %v325
      %vm328 = vcmask 64512
      %v330 = vsel %vm328, %v291, 0
      %v333 = vsel %vm328, %v292, 0
      %v336 = vsel %vm328, %v293, 0
      %v339 = vsel %vm328, %v294, 0
      %vm341 = vcmask 1043456
      %v343 = vsel %vm341, %v296, 0
      %345 = vmatprep.subr.bf16.mxu0 0
      %346 = vmatpush1.bf16.msra.mxu0 0
      %347 = vmatprep.subr.bf16.mxu0 0
      %348 = vmatpush1.bf16.msra.mxu0 0
      %349 = vmatprep.subr.bf16.mxu0 0
      %350 = vmatpush1.bf16.msra.mxu0 0
      %351 = vmatprep.subr.bf16.mxu0 0
      %352 = vmatpush1.bf16.msra.mxu0 0
      %353 = vmatprep.subr.bf16.mxu0 0
      %354 = vmatpush1.bf16.msra.mxu0 0
      %355 = vmatprep.subr.bf16.mxu0 0
      %356 = vmatpush1.bf16.msra.mxu0 0
      %357 = vmatprep.subr.bf16.mxu0 0
      %358 = vmatpush1.bf16.msra.mxu0 0
      %359 = vmatprep.subr.bf16.mxu0 0
      %360 = vmatpush1.bf16.msra.mxu0 %v343
      %361 = vmatprep.subr.bf16.mxu0 0
      %362 = vmatpush2.bf16.msra.mxu0 0
      %363 = vmatprep.subr.bf16.mxu0 0
      %364 = vmatpush2.bf16.msra.mxu0 0
      %365 = vmatprep.subr.bf16.mxu0 0
      %366 = vmatpush2.bf16.msra.mxu0 0
      %367 = vmatprep.subr.bf16.mxu0 0
      %368 = vmatpush2.bf16.msra.mxu0 0
      %369 = vmatprep.subr.bf16.mxu0 0
      %370 = vmatpush2.bf16.msra.mxu0 0
      %371 = vmatprep.subr.bf16.mxu0 0
      %372 = vmatpush2.bf16.msra.mxu0 0
      %373 = vmatprep.subr.bf16.mxu0 0
      %374 = vmatpush2.bf16.msra.mxu0 0
      %375 = vmatprep.subr.bf16.mxu0 0
      %376 = vmatpush2.bf16.msra.mxu0 0
      %377 = vmatprep.mubr.bf16.mxu0 0
      %378 = vmatmul.mubr.bf16.gmra.mxu0 %v330
      %v379 = vpop.f32.mrf.mxu0
      %v380 = vadd.f32 %v326, %v379
      %v381 = vpop.f32.mrf.mxu0
      %v382 = vpop.f32.mrf.mxu0
      %v383 = vadd.f32 %v326, %v382
      %v384 = vpop.f32.mrf.mxu0
      %385 = vmatprep.mubr.bf16.mxu0 0
      %386 = vmatmul.mubr.bf16.gmra.mxu0 %v333
      %v387 = vpop.f32.mrf.mxu0
      %v388 = vadd.f32 %v326, %v387
      %v389 = vpop.f32.mrf.mxu0
      %v390 = vpop.f32.mrf.mxu0
      %v391 = vadd.f32 %v326, %v390
      %v392 = vpop.f32.mrf.mxu0
      %393 = vmatprep.mubr.bf16.mxu0 0
      %394 = vmatmul.mubr.bf16.gmra.mxu0 %v336
      %v395 = vpop.f32.mrf.mxu0
      %v396 = vadd.f32 %v326, %v395
      %v397 = vpop.f32.mrf.mxu0
      %v398 = vpop.f32.mrf.mxu0
      %v399 = vadd.f32 %v326, %v398
      %v400 = vpop.f32.mrf.mxu0
      %401 = vmatprep.mubr.bf16.mxu0 0
      %402 = vmatmul.mubr.bf16.gmra.mxu0 %v339
      %v403 = vpop.f32.mrf.mxu0
      %v404 = vadd.f32 %v326, %v403
      %v405 = vpop.f32.mrf.mxu0
      %v406 = vpop.f32.mrf.mxu0
      %v407 = vadd.f32 %v326, %v406
      %v408 = vpop.f32.mrf.mxu0
      %409 = vdwg.mxu0
      %v410 = vmax.f32 %v380, 0.0
      %v411 = vmax.f32 %v383, 0.0
      %v412 = vmax.f32 %v388, 0.0
      %v413 = vmax.f32 %v391, 0.0
      %v414 = vmax.f32 %v396, 0.0
      %v415 = vmax.f32 %v399, 0.0
      %v416 = vmax.f32 %v404, 0.0
      %v417 = vmax.f32 %v407, 0.0
      %v418 = vpack.c.bf16 %v411, %v410
      %v419 = vpack.c.bf16 %v413, %v412
      %v420 = vpack.c.bf16 %v415, %v414
      %v421 = vpack.c.bf16 %v417, %v416
      %v422 = vld [vmem:[%s4] sm:$0x1]
      %v424 = vlaneseq
      %v425 = vshrl.u32 %v424, 7
      %v426 = vsub.s32 0, %v425
      %v427 = vrot.slane %v422, %v426
      %vm429 = vcmask 523264
      %v431 = vsel %vm429, %v418, 0
      %v434 = vsel %vm429, %v419, 0
      %v437 = vsel %vm429, %v420, 0
      %v440 = vsel %vm429, %v421, 0
      %442 = vmatprep.subr.bf16.mxu0 0
      %443 = vmatpush1.bf16.msra.mxu0 0
      %444 = vmatprep.subr.bf16.mxu0 0
      %445 = vmatpush1.bf16.msra.mxu0 0
      %446 = vmatprep.subr.bf16.mxu0 0
      %447 = vmatpush1.bf16.msra.mxu0 0
      %448 = vmatprep.subr.bf16.mxu0 0
      %449 = vmatpush1.bf16.msra.mxu0 0
      %450 = vmatprep.subr.bf16.mxu0 0
      %451 = vmatpush1.bf16.msra.mxu0 %v308
      %452 = vmatprep.subr.bf16.mxu0 0
      %453 = vmatpush1.bf16.msra.mxu0 %v307
      %454 = vmatprep.subr.bf16.mxu0 0
      %455 = vmatpush1.bf16.msra.mxu0 %v306
      %456 = vmatprep.subr.bf16.mxu0 0
      %457 = vmatpush1.bf16.msra.mxu0 %v305
      %458 = vmatprep.subr.bf16.mxu0 0
      %459 = vmatpush2.bf16.msra.mxu0 0
      %460 = vmatprep.subr.bf16.mxu0 0
      %461 = vmatpush2.bf16.msra.mxu0 0
      %462 = vmatprep.subr.bf16.mxu0 0
      %463 = vmatpush2.bf16.msra.mxu0 0
      %464 = vmatprep.subr.bf16.mxu0 0
      %465 = vmatpush2.bf16.msra.mxu0 0
      %466 = vmatprep.subr.bf16.mxu0 0
      %467 = vmatpush2.bf16.msra.mxu0 0
      %468 = vmatprep.subr.bf16.mxu0 0
      %469 = vmatpush2.bf16.msra.mxu0 0
      %470 = vmatprep.subr.bf16.mxu0 0
      %471 = vmatpush2.bf16.msra.mxu0 0
      %472 = vmatprep.subr.bf16.mxu0 0
      %473 = vmatpush2.bf16.msra.mxu0 0
      %474 = vmatprep.mubr.bf16.mxu0 0
      %475 = vmatmul.mubr.bf16.gmra.mxu0 %v431
      %v476 = vpop.f32.mrf.mxu0
      %v477 = vadd.f32 %v427, %v476
      %v478 = vpop.f32.mrf.mxu0
      %v479 = vpop.f32.mrf.mxu0
      %v480 = vadd.f32 %v427, %v479
      %v481 = vpop.f32.mrf.mxu0
      %482 = vmatprep.mubr.bf16.mxu0 0
      %483 = vmatmul.mubr.bf16.gmra.mxu0 %v434
      %v484 = vpop.f32.mrf.mxu0
      %v485 = vadd.f32 %v427, %v484
      %v486 = vpop.f32.mrf.mxu0
      %v487 = vpop.f32.mrf.mxu0
      %v488 = vadd.f32 %v427, %v487
      %v489 = vpop.f32.mrf.mxu0
      %490 = vmatprep.mubr.bf16.mxu0 0
      %491 = vmatmul.mubr.bf16.gmra.mxu0 %v437
      %v492 = vpop.f32.mrf.mxu0
      %v493 = vadd.f32 %v427, %v492
      %v494 = vpop.f32.mrf.mxu0
      %v495 = vpop.f32.mrf.mxu0
      %v496 = vadd.f32 %v427, %v495
      %v497 = vpop.f32.mrf.mxu0
      %498 = vmatprep.mubr.bf16.mxu0 0
      %499 = vmatmul.mubr.bf16.gmra.mxu0 %v440
      %v500 = vpop.f32.mrf.mxu0
      %v501 = vadd.f32 %v427, %v500
      %v502 = vpop.f32.mrf.mxu0
      %v503 = vpop.f32.mrf.mxu0
      %v504 = vadd.f32 %v427, %v503
      %v505 = vpop.f32.mrf.mxu0
      %506 = vdwg.mxu0
      %v507 = vmax.f32 %v477, 0.0
      %v508 = vmax.f32 %v480, 0.0
      %v509 = vmax.f32 %v485, 0.0
      %v510 = vmax.f32 %v488, 0.0
      %v511 = vmax.f32 %v493, 0.0
      %v512 = vmax.f32 %v496, 0.0
      %v513 = vmax.f32 %v501, 0.0
      %v514 = vmax.f32 %v504, 0.0
      %v515 = vpack.c.bf16 %v508, %v507
      %v516 = vpack.c.bf16 %v510, %v509
      %v517 = vpack.c.bf16 %v512, %v511
      %v518 = vpack.c.bf16 %v514, %v513
      %v519 = vld [vmem:[%s6] sm:$0x1]
      %v521 = vlaneseq
      %v522 = vshrl.u32 %v521, 7
      %v523 = vsub.s32 0, %v522
      %v524 = vrot.slane %v519, %v523
      %v527 = vsel %vm429, %v515, 0
      %v530 = vsel %vm429, %v516, 0
      %v533 = vsel %vm429, %v517, 0
      %v536 = vsel %vm429, %v518, 0
      %538 = vmatprep.subr.bf16.mxu0 0
      %539 = vmatpush1.bf16.msra.mxu0 0
      %540 = vmatprep.subr.bf16.mxu0 0
      %541 = vmatpush1.bf16.msra.mxu0 0
      %542 = vmatprep.subr.bf16.mxu0 0
      %543 = vmatpush1.bf16.msra.mxu0 0
      %544 = vmatprep.subr.bf16.mxu0 0
      %545 = vmatpush1.bf16.msra.mxu0 0
      %546 = vmatprep.subr.bf16.mxu0 0
      %547 = vmatpush1.bf16.msra.mxu0 %v320
      %548 = vmatprep.subr.bf16.mxu0 0
      %549 = vmatpush1.bf16.msra.mxu0 %v319
      %550 = vmatprep.subr.bf16.mxu0 0
      %551 = vmatpush1.bf16.msra.mxu0 %v318
      %552 = vmatprep.subr.bf16.mxu0 0
      %553 = vmatpush1.bf16.msra.mxu0 %v317
      %554 = vmatprep.subr.bf16.mxu0 0
      %555 = vmatpush2.bf16.msra.mxu0 0
      %556 = vmatprep.subr.bf16.mxu0 0
      %557 = vmatpush2.bf16.msra.mxu0 0
      %558 = vmatprep.subr.bf16.mxu0 0
      %559 = vmatpush2.bf16.msra.mxu0 0
      %560 = vmatprep.subr.bf16.mxu0 0
      %561 = vmatpush2.bf16.msra.mxu0 0
      %562 = vmatprep.subr.bf16.mxu0 0
      %563 = vmatpush2.bf16.msra.mxu0 0
      %564 = vmatprep.subr.bf16.mxu0 0
      %565 = vmatpush2.bf16.msra.mxu0 0
      %566 = vmatprep.subr.bf16.mxu0 0
      %567 = vmatpush2.bf16.msra.mxu0 0
      %568 = vmatprep.subr.bf16.mxu0 0
      %569 = vmatpush2.bf16.msra.mxu0 0
      %570 = vmatprep.mubr.bf16.mxu0 0
      %571 = vmatmul.mubr.bf16.gmra.mxu0 %v527
      %v572 = vpop.f32.mrf.mxu0
      %v573 = vadd.f32 %v524, %v572
      %v574 = vpop.f32.mrf.mxu0
      %v575 = vpop.f32.mrf.mxu0
      %v576 = vadd.f32 %v524, %v575
      %v577 = vpop.f32.mrf.mxu0
      %578 = vmatprep.mubr.bf16.mxu0 0
      %579 = vmatmul.mubr.bf16.gmra.mxu0 %v530
      %v580 = vpop.f32.mrf.mxu0
      %v581 = vadd.f32 %v524, %v580
      %v582 = vpop.f32.mrf.mxu0
      %v583 = vpop.f32.mrf.mxu0
      %v584 = vadd.f32 %v524, %v583
      %v585 = vpop.f32.mrf.mxu0
      %586 = vmatprep.mubr.bf16.mxu0 0
      %587 = vmatmul.mubr.bf16.gmra.mxu0 %v533
      %v588 = vpop.f32.mrf.mxu0
      %v589 = vadd.f32 %v524, %v588
      %v590 = vpop.f32.mrf.mxu0
      %v591 = vpop.f32.mrf.mxu0
      %v592 = vadd.f32 %v524, %v591
      %v593 = vpop.f32.mrf.mxu0
      %594 = vmatprep.mubr.bf16.mxu0 0
      %595 = vmatmul.mubr.bf16.gmra.mxu0 %v536
      %v596 = vpop.f32.mrf.mxu0
      %v597 = vadd.f32 %v524, %v596
      %v598 = vpop.f32.mrf.mxu0
      %v599 = vpop.f32.mrf.mxu0
      %v600 = vadd.f32 %v524, %v599
      %v601 = vpop.f32.mrf.mxu0
      %602 = vdwg.mxu0
      %vm603 = vcmask 31744
      %604 = vst.msk [vmem:[%s280] sm:$0xff] %vm603, %v573
      %605 = vst.msk [vmem:[%s280 + $0x8] sm:$0xff] %vm603, %v576
      %606 = vst.msk [vmem:[%s280 + $0x10] sm:$0xff] %vm603, %v581
      %607 = vst.msk [vmem:[%s280 + $0x18] sm:$0xff] %vm603, %v584
      %608 = vst.msk [vmem:[%s280 + $0x20] sm:$0xff] %vm603, %v589
      %609 = vst.msk [vmem:[%s280 + $0x28] sm:$0xff] %vm603, %v592
      %610 = vst.msk [vmem:[%s280 + $0x30] sm:$0xff] %vm603, %v597
      %611 = vst.msk [vmem:[%s280 + $0x38] sm:$0xff] %vm603, %v600
      %s612 = smul.u32 8, %s18
      %p613 = scmp.lt.s32.totalorder %s612, 31
      %s614 = scalar_select %p613, %s612, 31
      %s615 = smul.addr %s614, 8
      %s616 = scalar_lea.vmem %s7, %s615
      // Predicated region
      $region49: #{tpu_custom_call.1} parent=47 // pred_check
        %p617 = pneg %p188
      $region50: #{tpu_custom_call.1} parent=47 // pred_check_branch
        %619 = sbr.rel (%p617) target = $region52
      $region51: #{tpu_custom_call.1} parent=47 // pred_region
        %s620 = smul.u32 8, %s18
      $region52: #{tpu_custom_call.1} parent=47 // pred_fallthru
        _
    $region48: #{tpu_custom_call.1} parent=5 // pred_fallthru
      _
    %p621 = scmp.le.s32.totalorder 2, %s13
    // Predicated region
    $region53: #{tpu_custom_call.1} parent=5 // pred_check
      %p622 = pneg %p621
    $region54: #{tpu_custom_call.1} parent=5 // pred_check_branch
      %624 = sbr.rel (%p622) target = $region56
    $region55: #{tpu_custom_call.1} parent=5 // pred_region
      %s625 = ssub.s32 %s13, 2
      // Predicated region
      $region57: #{tpu_custom_call.1} parent=55 // pred_check
        %p626 = pneg %p194
      $region58: #{tpu_custom_call.1} parent=55 // pred_check_branch
        %628 = sbr.rel (%p626) target = $region60
      $region59: #{tpu_custom_call.1} parent=55 // pred_region
        %s629 = smul.u32 8, %s19
        %p630 = scmp.lt.s32.totalorder %s629, 31
        %s631 = scalar_select %p630, %s629, 31
        %s632 = smul.addr %s631, 8
        %s633 = scalar_lea.vmem %s7, %s632
      $region60: #{tpu_custom_call.1} parent=55 // pred_fallthru
        _
    $region56: #{tpu_custom_call.1} parent=5 // pred_fallthru
      _
  $region6: #{tpu_custom_call.1} parent=0 // loop_footer
    %s17 = sadd.s32 1, %s13
  $region7: #{tpu_custom_call.1} parent=0 // loop_footer_branch
    %12 = sbr.rel target = $region3
  $region8: #{tpu_custom_call.1} parent=0 // loop_exit
    _

</llo_original>
